<compile_context>
chip_gen: v5e
topology: v5e:2x2
jax: 0.10.0
libtpu: 0.0.40
codegen_flags: <defaults>
</compile_context>

<pallas_src>
import functools

import jax
import jax.numpy as jnp
from jax.experimental import pallas as pl
from jax.experimental.pallas import tpu as pltpu

_LANE = 128


def _round_up(x, m):
    return ((x + m - 1) // m) * m


def _sublane(dtype):
    # second-minor alignment: 8 rows for 4-byte, 16 for 2-byte, 32 for 1-byte
    return max(8, 32 // jnp.dtype(dtype).itemsize)


def _chip_info():
    """Returns (vmem_capacity_bytes, bf16_native) with conservative fallbacks."""
    kind = ""
    try:
        kind = jax.devices()[0].device_kind.lower()
    except Exception:
        pass
    bf16_native = ("v6" in kind) or ("v7" in kind) or ("7x" in kind)
    vmem = None
    try:
        vmem = int(pltpu.get_tpu_info().vmem_capacity_bytes)
    except Exception:
        vmem = None
    if not vmem:
        if ("v7" in kind) or ("7x" in kind):
            vmem = 64 * 1024 * 1024
        elif any(g in kind for g in ("v4", "v5", "v6")):
            vmem = 128 * 1024 * 1024
        else:
            vmem = 64 * 1024 * 1024  # conservative default
    return vmem, bf16_native


def _plan_tiles(n_rows, c_in, hidden, out_w, x_bytes, w_bytes, o_bytes,
                vmem_budget, sublane, tile_n=None, tile_h=None):
    """Pick (tile_n, tile_h, h_total).  Weights stay fully resident when they
    fit in ~half the budget; otherwise the hidden dim is tiled (streamed)."""
    h_pad = _round_up(hidden, _LANE)

    def weight_bytes(th, bufs):
        return bufs * th * (c_in + out_w) * w_bytes

    if tile_h is None:
        th = h_pad
        if weight_bytes(th, 1) > vmem_budget // 2:
            # hidden-tiled, double-buffered streamed weights
            while th > _LANE and weight_bytes(th, 2) > vmem_budget // 2:
                th = max(_LANE, _round_up(th // 2, _LANE))
    else:
        th = min(_round_up(tile_h, _LANE), h_pad)
    h_tiles = pl.cdiv(h_pad, th)
    h_total = h_tiles * th
    w_bufs = 1 if h_tiles == 1 else 2

    if tile_n is None:
        row_budget = vmem_budget - weight_bytes(th, w_bufs)
        per_row = (3 * c_in * x_bytes          # x tiles (up to 3-deep pipeline)
                   + 2 * out_w * o_bytes       # out tiles (double-buffered)
                   + out_w * 4                 # f32 accumulator scratch
                   + th * (4 + w_bytes)        # f32 h_j + its narrow copy
                   + out_w * 4)                # dot output temp
        cap = min(1024, _round_up(max(n_rows, 1), sublane))
        tile_n = min(cap, max(sublane, row_budget // per_row))
        if tile_n >= _LANE:
            tile_n = (tile_n // _LANE) * _LANE  # MXU-friendly M dimension
        else:
            tile_n = _round_up(tile_n, sublane)
        tile_n = min(tile_n, cap)
    else:
        tile_n = max(sublane, _round_up(tile_n, sublane))
    return int(tile_n), int(th), int(h_total)


def _adapter_kernel(x_ref, w1_ref, w2_ref, o_ref, acc_ref, *, compute_dtype):
    # x_ref:  (tile_n, c_in)     w1_ref: (c_in, tile_h)
    # w2_ref: (tile_h, out_w)    o_ref:  (tile_n, out_w)
    # acc_ref: f32 (tile_n, out_w) scratch, persistent across the hidden axis.
    j = pl.program_id(1)

    @pl.when(j == 0)
    def _():
        acc_ref[...] = jnp.zeros_like(acc_ref)

    x = x_ref[...].astype(compute_dtype)             # cast in-kernel (no HBM pass)
    # h_j = relu(x @ W1[:, j-th hidden tile]); exact under hidden tiling
    # because ReLU is elementwise over the hidden dim.
    h = jnp.dot(x, w1_ref[...], preferred_element_type=jnp.float32)
    h = jnp.maximum(h, 0.0)                           # ReLU in f32
    acc_ref[...] += jnp.dot(h.astype(compute_dtype), w2_ref[...],
                            preferred_element_type=jnp.float32)

    @pl.when(j == pl.num_programs(1) - 1)
    def _():
        o_ref[...] = jnp.maximum(acc_ref[...], 0.0).astype(o_ref.dtype)


def _maybe_buffered_spec(shape, index_map, buffers=None):
    if buffers is not None:
        try:
            return pl.BlockSpec(shape, index_map, pipeline_mode=pl.Buffered(buffers))
        except (TypeError, AttributeError):
            pass  # older jax without pipeline_mode: default double-buffering
    return pl.BlockSpec(shape, index_map)


def adapter_forward(x, w1, w2, *, compute_dtype="auto", tile_n=None, tile_h=None,
                    min_pallas_rows=256):
    """Adapter forward.

    x : [..., c_in]  (arbitrary leading dims, like nn.Linear)
    w1: [hidden, c_in]  torch Linear layout (hidden = c_in // reduction)
    w2: [c_in, hidden]  torch Linear layout
    """
    c_in = x.shape[-1]
    hidden = w1.shape[0]
    assert w1.shape == (hidden, c_in), w1.shape
    assert w2.shape == (c_in, hidden), w2.shape

    lead = x.shape[:-1]
    x2 = x.reshape(-1, c_in)
    n_rows = x2.shape[0]
    out_dtype = x.dtype

    # Tiny-N fast path: pallas_call fixed overhead dominates; let XLA fuse it.
    if n_rows < min_pallas_rows:
        h = jnp.maximum(x2 @ w1.T, 0.0)
        y = jnp.maximum(h @ w2.T, 0.0)
        return y.astype(out_dtype).reshape(*lead, c_in)

    vmem_cap, bf16_native = _chip_info()
    vmem_limit = max(32 * 1024 * 1024, int(vmem_cap * 0.80))
    vmem_budget = int(vmem_cap * 0.55)   # headroom for compiler scratch & temps

    if compute_dtype == "auto":
        if bf16_native and jnp.dtype(x.dtype).itemsize >= 4:
            cdt = jnp.dtype(jnp.bfloat16)
        else:
            cdt = jnp.dtype(x.dtype) if jnp.issubdtype(x.dtype, jnp.floating) \
                else jnp.dtype(jnp.float32)
    elif compute_dtype is None:
        cdt = jnp.dtype(x.dtype) if jnp.issubdtype(x.dtype, jnp.floating) \
            else jnp.dtype(jnp.float32)
    else:
        cdt = jnp.dtype(compute_dtype)

    # Lane-dense output: widen only when c_in is not 128-aligned (rare).
    out_w = c_in if c_in % _LANE == 0 else _round_up(c_in, _LANE)

    sublane = _sublane(x.dtype)
    tile_n_v, th, h_total = _plan_tiles(
        n_rows, c_in, hidden, out_w,
        jnp.dtype(x.dtype).itemsize, cdt.itemsize, jnp.dtype(out_dtype).itemsize,
        vmem_budget, sublane, tile_n=tile_n, tile_h=tile_h)

    n_tiles = pl.cdiv(n_rows, tile_n_v)
    h_tiles = h_total // th

    # One-time wrapper transpose + zero-pad of the (tiny) weights:
    #   w1_t: (c_in, h_total), w2_t: (h_total, out_w)
    # -> both in-kernel dots are plain contractions; contraction dims are
    #    genuinely zero-padded (ReLU(0)=0, zero rows/cols contribute nothing).
    w1_t = jnp.pad(w1.T.astype(cdt), ((0, 0), (0, h_total - hidden)))
    w2_t = jnp.pad(w2.T.astype(cdt), ((0, h_total - hidden), (0, out_w - c_in)))

    # Deeper x pipeline only when x is the single streamed operand.
    x_buffers = 3 if (h_tiles == 1 and n_tiles >= 3) else None
    w_buffers = 1 if h_tiles == 1 else None   # resident weights: single buffer

    flops = 4 * n_rows * c_in * hidden        # two matmuls, 2 flop / MAC
    bytes_accessed = (x2.size * x2.dtype.itemsize
                      + n_rows * out_w * jnp.dtype(out_dtype).itemsize
                      + (w1_t.size + w2_t.size) * cdt.itemsize
                      * (1 if h_tiles == 1 else n_tiles))

    kernel = functools.partial(_adapter_kernel, compute_dtype=cdt)

    out = pl.pallas_call(
        kernel,
        out_shape=jax.ShapeDtypeStruct((n_rows, out_w), out_dtype),
        grid_spec=pltpu.PrefetchScalarGridSpec(
            num_scalar_prefetch=0,
            grid=(n_tiles, h_tiles),                       # reduction axis last
            in_specs=[
                _maybe_buffered_spec((tile_n_v, c_in), lambda i, j: (i, 0),
                                     buffers=x_buffers),    # x tile
                _maybe_buffered_spec((c_in, th), lambda i, j: (0, j),
                                     buffers=w_buffers),    # W1^T tile
                _maybe_buffered_spec((th, out_w), lambda i, j: (j, 0),
                                     buffers=w_buffers),    # W2^T tile
            ],
            out_specs=pl.BlockSpec((tile_n_v, out_w), lambda i, j: (i, 0)),
            scratch_shapes=[pltpu.VMEM((tile_n_v, out_w), jnp.float32)],
        ),
        compiler_params=pltpu.CompilerParams(
            dimension_semantics=("parallel", "arbitrary"),   # rows shard across TCs
            vmem_limit_bytes=int(vmem_limit),
        ),
        cost_estimate=pl.CostEstimate(flops=int(flops), transcendentals=0,
                                      bytes_accessed=int(bytes_accessed)),
    )(x2, w1_t, w2_t)

    if out_w != c_in:
        out = out[:, :c_in]    # only for non-128-aligned c_in
    return out.reshape(*lead, c_in)


def adapter_ref(x, w1, w2, precision=None):
    h = jnp.maximum(jnp.einsum("...i,hi->...h", x, w1, precision=precision), 0.0)
    return jnp.maximum(jnp.einsum("...h,ch->...c", h, w2, precision=precision), 0.0)


if __name__ == "__main__":
    key = jax.random.PRNGKey(0)
    ks = jax.random.split(key, 9)
    hp = jax.lax.Precision.HIGHEST

    # 1) Tiny module-default shapes (c_in=32, reduction=4), forced through the
    #    Pallas path in f32 (exact; unaligned c_in exercises the widened output).
    c_in, red = 32, 4
    hidden = c_in // red
    N = 8
    x = jax.random.normal(ks[0], (N, c_in), jnp.float32)
    w1 = jax.random.normal(ks[1], (hidden, c_in), jnp.float32) / jnp.sqrt(c_in)
    w2 = jax.random.normal(ks[2], (c_in, hidden), jnp.float32) / jnp.sqrt(hidden)
    out = jax.block_until_ready(
        adapter_forward(x, w1, w2, compute_dtype=jnp.float32, min_pallas_rows=0))
    ref = adapter_ref(x, w1, w2, precision=hp)
    assert out.shape == (N, c_in)
    assert jnp.allclose(out, ref, atol=1e-2, rtol=1e-2), "f32 tiny-shape mismatch"

    # 2) 128-aligned c_in, ragged rows (300 = 2*128 + 44), auto compute dtype
    #    (bf16 on v6e/v7x), Buffered(3) x pipeline, zero wrapper pad/slice ops.
    c_in, red = 256, 4
    hidden = c_in // red
    N = 300
    x = jax.random.normal(ks[3], (N, c_in), jnp.float32)
    w1 = jax.random.normal(ks[4], (hidden, c_in), jnp.float32) / jnp.sqrt(c_in)
    w2 = jax.random.normal(ks[5], (c_in, hidden), jnp.float32) / jnp.sqrt(hidden)
    out = jax.block_until_ready(
        adapter_forward(x, w1, w2, tile_n=128, min_pallas_rows=0))
    ref = adapter_ref(x, w1, w2, precision=hp)
    assert out.shape == (N, c_in)
    assert jnp.allclose(out, ref, atol=5e-2, rtol=5e-2), "ragged-row mismatch"

    # 3) Hidden-tiled accumulator path (tile_h forces 2 hidden tiles) with
    #    rank-3 input (leading dims flattened like nn.Linear).
    c_in, red = 512, 2
    hidden = c_in // red                       # 256 -> two 128-wide hidden tiles
    x = jax.random.normal(ks[6], (2, 128, c_in), jnp.float32)
    w1 = jax.random.normal(ks[7], (hidden, c_in), jnp.float32) / jnp.sqrt(c_in)
    w2 = jax.random.normal(ks[8], (c_in, hidden), jnp.float32) / jnp.sqrt(hidden)
    out = jax.block_until_ready(
        adapter_forward(x, w1, w2, compute_dtype=jnp.float32,
                        tile_n=128, tile_h=128, min_pallas_rows=0))
    ref = adapter_ref(x, w1, w2, precision=hp)
    assert out.shape == (2, 128, c_in)
    assert jnp.allclose(out, ref, atol=1e-2, rtol=1e-2), "hidden-tiled mismatch"

    print("KERNEL_OK")
</pallas_src>

<mosaic_0001>
module attributes {stable_mosaic.version = 11 : i64} {
  func.func @_adapter_kernel(%arg0: i32, %arg1: i32, %arg2: memref<8x32xf32, #tpu.memory_space<vmem>>, %arg3: memref<32x128xf32, #tpu.memory_space<vmem>>, %arg4: memref<128x128xf32, #tpu.memory_space<vmem>>, %arg5: memref<8x128xf32, #tpu.memory_space<vmem>>, %arg6: memref<8x128xf32, #tpu.memory_space<vmem>>) attributes {dimension_semantics = [#tpu.dimension_semantics<parallel>, #tpu.dimension_semantics<arbitrary>], iteration_bounds = array<i64: 1, 1>, scalar_prefetch = 0 : i64, scratch_operands = 1 : i64, tpu.core_type = #tpu.core_type<tc>, window_params = [{transform_indices = @transform_0, window_bounds = array<i64: 8, 32>}, {pipeline_mode = #tpu.pipeline_mode<synchronous>, transform_indices = @transform_1, window_bounds = array<i64: 32, 128>}, {pipeline_mode = #tpu.pipeline_mode<synchronous>, transform_indices = @transform_2, window_bounds = array<i64: 128, 128>}, {transform_indices = @transform_3, window_bounds = array<i64: 8, 128>}]} {
    %c0_i32 = arith.constant 0 : i32
    %0 = arith.cmpi eq, %arg1, %c0_i32 : i32
    %1 = arith.extui %0 : i1 to i32
    %c0_i32_0 = arith.constant 0 : i32
    %2 = arith.cmpi ne, %1, %c0_i32_0 : i32
    scf.if %2 {
      %cst_14 = arith.constant 0.000000e+00 : f32
      %16 = vector.broadcast %cst_14 : f32 to vector<8x128xf32>
      %c0_15 = arith.constant 0 : index
      %c0_16 = arith.constant 0 : index
      %17 = vector.load %arg6[%c0_15, %c0_16] : memref<8x128xf32, #tpu.memory_space<vmem>>, vector<8x128xf32>
      tpu.vector_store %arg6[%c0_15, %c0_16], %16 {strides = array<i32>} : memref<8x128xf32, #tpu.memory_space<vmem>>, vector<8x128xf32>,
    } else {
    }
    %c0 = arith.constant 0 : index
    %c0_1 = arith.constant 0 : index
    %3 = vector.load %arg2[%c0, %c0_1] : memref<8x32xf32, #tpu.memory_space<vmem>>, vector<8x32xf32>
    %c0_2 = arith.constant 0 : index
    %c0_3 = arith.constant 0 : index
    %4 = vector.load %arg3[%c0_2, %c0_3] : memref<32x128xf32, #tpu.memory_space<vmem>>, vector<32x128xf32>
    %cst = arith.constant dense<0.000000e+00> : vector<8x128xf32>
    %5 = tpu.matmul %3, %4, %cst {dimension_numbers = #tpu.dot_dimension_numbers<[1], [0], [0], [1], [0, 0, 1, 1], [], []>} : vector<8x32xf32>, vector<32x128xf32>, vector<8x128xf32> -> vector<8x128xf32>
    %cst_4 = arith.constant 0.000000e+00 : f32
    %6 = vector.broadcast %cst_4 : f32 to vector<8x128xf32>
    %7 = arith.maximumf %5, %6 : vector<8x128xf32>
    %c0_5 = arith.constant 0 : index
    %c0_6 = arith.constant 0 : index
    %8 = vector.load %arg6[%c0_5, %c0_6] : memref<8x128xf32, #tpu.memory_space<vmem>>, vector<8x128xf32>
    %c0_7 = arith.constant 0 : index
    %c0_8 = arith.constant 0 : index
    %9 = vector.load %arg4[%c0_7, %c0_8] : memref<128x128xf32, #tpu.memory_space<vmem>>, vector<128x128xf32>
    %cst_9 = arith.constant dense<0.000000e+00> : vector<8x128xf32>
    %10 = tpu.matmul %7, %9, %cst_9 {dimension_numbers = #tpu.dot_dimension_numbers<[1], [0], [0], [1], [0, 0, 1, 1], [], []>} : vector<8x128xf32>, vector<128x128xf32>, vector<8x128xf32> -> vector<8x128xf32>
    %11 = arith.addf %8, %10 : vector<8x128xf32>
    %c0_10 = arith.constant 0 : index
    %c0_11 = arith.constant 0 : index
    %12 = vector.load %arg6[%c0_10, %c0_11] : memref<8x128xf32, #tpu.memory_space<vmem>>, vector<8x128xf32>
    tpu.vector_store %arg6[%c0_10, %c0_11], %11 {strides = array<i32>} : memref<8x128xf32, #tpu.memory_space<vmem>>, vector<8x128xf32>,
    %c0_i32_12 = arith.constant 0 : i32
    %13 = arith.cmpi eq, %arg1, %c0_i32_12 : i32
    %14 = arith.extui %13 : i1 to i32
    %c0_i32_13 = arith.constant 0 : i32
    %15 = arith.cmpi ne, %14, %c0_i32_13 : i32
    scf.if %15 {
      %c0_14 = arith.constant 0 : index
      %c0_15 = arith.constant 0 : index
      %16 = vector.load %arg6[%c0_14, %c0_15] : memref<8x128xf32, #tpu.memory_space<vmem>>, vector<8x128xf32>
      %cst_16 = arith.constant 0.000000e+00 : f32
      %17 = vector.broadcast %cst_16 : f32 to vector<8x128xf32>
      %18 = arith.maximumf %16, %17 : vector<8x128xf32>
      %c0_17 = arith.constant 0 : index
      %c0_18 = arith.constant 0 : index
      %19 = vector.load %arg5[%c0_17, %c0_18] : memref<8x128xf32, #tpu.memory_space<vmem>>, vector<8x128xf32>
      tpu.vector_store %arg5[%c0_17, %c0_18], %18 {strides = array<i32>} : memref<8x128xf32, #tpu.memory_space<vmem>>, vector<8x128xf32>,
    } else {
    }
    return
  }
  func.func @transform_0(%arg0: i32, %arg1: i32) -> (i32, i32) {
    %c0_i32 = arith.constant 0 : i32
    %c0_i32_0 = arith.constant 0 : i32
    return %arg0, %c0_i32 : i32, i32
  }
  func.func @transform_1(%arg0: i32, %arg1: i32) -> (i32, i32) {
    %c0_i32 = arith.constant 0 : i32
    %c0_i32_0 = arith.constant 0 : i32
    return %c0_i32, %arg1 : i32, i32
  }
  func.func @transform_2(%arg0: i32, %arg1: i32) -> (i32, i32) {
    %c0_i32 = arith.constant 0 : i32
    %c0_i32_0 = arith.constant 0 : i32
    return %arg1, %c0_i32 : i32, i32
  }
  func.func @transform_3(%arg0: i32, %arg1: i32) -> (i32, i32) {
    %c0_i32 = arith.constant 0 : i32
    %c0_i32_0 = arith.constant 0 : i32
    return %arg0, %c0_i32 : i32, i32
  }
}

</mosaic_0001>

<llo_original>
// kernel: tpu_custom_call.1
$region0: #{tpu_custom_call.1}
  #allocation0 [shape = 'u32[]', space=smem, size = 0x4, offset = 0x4, fixed_abs, tag = 'smem constant byte address 0x4 - core index']
  #allocation1 [shape = 'u32[72,128]{1,0:T(1,128)}', space=vmem, size = 0x9000, scoped, tag = 'internal scratch']
  #allocation2 [shape = 'f32[8,128]{1,0:T(8,128)}', space=vmem, size = 0x1000, scoped, tag = 'scratch operand']
  %s0 = inlined_call_operand.hbm [shape: f32[8,32], index: 0, kind: input, shape index: {}]
  %s1 = inlined_call_operand.hbm [shape: f32[32,128], index: 1, kind: input, shape index: {}]
  %s2 = inlined_call_operand.hbm [shape: f32[128,128], index: 2, kind: input, shape index: {}]
  %s3 = inlined_call_operand.hbm [shape: f32[8,128], index: 3, kind: output, shape index: {}]
  %s4 = sld [smem:[#allocation0]]
  $region42: #{tpu_custom_call.1} parent=0
    _
  %s6 = ssub.s32 1, %s4
  %s7 = scalar_select 0, %s6, %s4
  $region1: #{tpu_custom_call.1} parent=0
    #allocation3 [shape = 'u8[4096]{0}', space=vmem, size = 0x1000, scoped, tag = 'input window, operand 0, single buffered']
    #allocation4 [shape = 's32[1]{0}', space=sflag, size = 0x4, scoped, tag = 'scoped memory for tpu_custom_call.1']
    #allocation5 [shape = 's32[1]{0}', space=sflag, size = 0x4, scoped, tag = 'scoped memory for tpu_custom_call.1']
    #allocation6 [shape = 'u8[16384]{0}', space=vmem, size = 0x4000, scoped, tag = 'input window, operand 1, single buffered']
    #allocation7 [shape = 's32[1]{0}', space=sflag, size = 0x4, scoped, tag = 'scoped memory for tpu_custom_call.1']
    #allocation8 [shape = 'u8[65536]{0}', space=vmem, size = 0x10000, scoped, tag = 'input window, operand 2, single buffered']
    #allocation9 [shape = 'u8[4096]{0}', space=vmem, size = 0x1000, scoped, tag = 'output window, operand 0, single buffered']
    %8 = vsyncpa [#allocation4], 0
    %9 = vsyncpa [#allocation7], 0
    %10 = vsyncpa [#allocation5], 0
    // Predicated region
    $region2: #{tpu_custom_call.1} parent=1 // pred_check
      _
    $region3: #{tpu_custom_call.1} parent=1 // pred_check_branch
      %12 = sbr.rel (0) target = $region5
    $region4: #{tpu_custom_call.1} parent=1 // pred_region
      %14 = vsyncadd [#allocation4], 0
      %s16 = sshll.u32 %s0, 4
      %s17 = int_to_ptr.hbm [resolvable:$true] %s16
      %s18 = sshll.u32 [#allocation3], 4
      %s19 = int_to_ptr.vmem [resolvable:$true] %s18
      %21 = dma.hbm_to_vmem [thread:$0]  %s17, 128, %s19, [#allocation4]
    $region5: #{tpu_custom_call.1} parent=1 // pred_fallthru
      _
    // Predicated region
    $region6: #{tpu_custom_call.1} parent=1 // pred_check
      _
    $region7: #{tpu_custom_call.1} parent=1 // pred_check_branch
      %23 = sbr.rel (0) target = $region9
    $region8: #{tpu_custom_call.1} parent=1 // pred_region
      %25 = vsyncadd [#allocation7], 0
      %s26 = sshll.u32 %s1, 4
      %s27 = int_to_ptr.hbm [resolvable:$true] %s26
      %s28 = sshll.u32 [#allocation6], 4
      %s29 = int_to_ptr.vmem [resolvable:$true] %s28
      %34 = dma.hbm_to_vmem [thread:$0]  %s27, 512, %s29, [#allocation7], 128, 128, 8
    $region9: #{tpu_custom_call.1} parent=1 // pred_fallthru
      _
    // Predicated region
    $region10: #{tpu_custom_call.1} parent=1 // pred_check
      _
    $region11: #{tpu_custom_call.1} parent=1 // pred_check_branch
      %36 = sbr.rel (0) target = $region13
    $region12: #{tpu_custom_call.1} parent=1 // pred_region
      %38 = vsyncadd [#allocation7], 0
      %s39 = sshll.u32 %s2, 4
      %s40 = int_to_ptr.hbm [resolvable:$true] %s39
      %s41 = sshll.u32 [#allocation8], 4
      %s42 = int_to_ptr.vmem [resolvable:$true] %s41
      %47 = dma.hbm_to_vmem [thread:$0]  %s40, 2048, %s42, [#allocation7], 128, 128, 8
    $region13: #{tpu_custom_call.1} parent=1 // pred_fallthru
      _
    // Predicated region
    $region14: #{tpu_custom_call.1} parent=1 // pred_check
      _
    $region15: #{tpu_custom_call.1} parent=1 // pred_check_branch
      %49 = sbr.rel (0) target = $region17
    $region16: #{tpu_custom_call.1} parent=1 // pred_region
      %51 = dma.done [#allocation4], 128
    $region17: #{tpu_custom_call.1} parent=1 // pred_fallthru
      _
    // Predicated region
    $region18: #{tpu_custom_call.1} parent=1 // pred_check
      _
    $region19: #{tpu_custom_call.1} parent=1 // pred_check_branch
      %53 = sbr.rel (0) target = $region21
    $region20: #{tpu_custom_call.1} parent=1 // pred_region
      %55 = dma.done [#allocation7], 512
    $region21: #{tpu_custom_call.1} parent=1 // pred_fallthru
      _
    // Predicated region
    $region22: #{tpu_custom_call.1} parent=1 // pred_check
      _
    $region23: #{tpu_custom_call.1} parent=1 // pred_check_branch
      %57 = sbr.rel (0) target = $region25
    $region24: #{tpu_custom_call.1} parent=1 // pred_region
      %59 = dma.done [#allocation7], 2048
    $region25: #{tpu_custom_call.1} parent=1 // pred_fallthru
      _
    %p60 = scmp.eq.s32.totalorder 0, 0
    // Predicated region
    $region26: #{tpu_custom_call.1} parent=1 // pred_check
      %p61 = pneg %p60
    $region27: #{tpu_custom_call.1} parent=1 // pred_check_branch
      %63 = sbr.rel (%p61) target = $region29
    $region28: #{tpu_custom_call.1} parent=1 // pred_region
      %64 = vst [vmem:[#allocation2] sm:$0xff] 0.0
    $region29: #{tpu_custom_call.1} parent=1 // pred_fallthru
      _
    %v65 = vld [vmem:[#allocation3] sm:$0xff]
    %v66 = vld [vmem:[#allocation6] sm:$0xff]
    %v67 = vld [vmem:[#allocation6 + $0x8] sm:$0xff]
    %v68 = vld [vmem:[#allocation6 + $0x10] sm:$0xff]
    %v69 = vld [vmem:[#allocation6 + $0x18] sm:$0xff]
    %vm70 = vcmask 261120
    %v72 = vsel %vm70, %v65, 0
    %74 = vmatpush.msra.mxu0 0.0
    %75 = vmatpush.msra.mxu0 0.0
    %76 = vmatpush.msra.mxu0 0.0
    %77 = vmatpush.msra.mxu0 0.0
    %78 = vmatpush.msra.mxu0 0.0
    %79 = vmatpush.msra.mxu0 0.0
    %80 = vmatpush.msra.mxu0 0.0
    %81 = vmatpush.msra.mxu0 0.0
    %82 = vmatpush.msra.mxu0 0.0
    %83 = vmatpush.msra.mxu0 0.0
    %84 = vmatpush.msra.mxu0 0.0
    %85 = vmatpush.msra.mxu0 0.0
    %86 = vmatpush.msra.mxu0 %v69
    %87 = vmatpush.msra.mxu0 %v68
    %88 = vmatpush.msra.mxu0 %v67
    %89 = vmatpush.msra.mxu0 %v66
    %90 = vmatmul.f32.gmra.mxu0 %v72
    %v91 = vpop.f32.mrf.mxu0
    %v92 = vadd.f32 0.0, %v91
    %93 = vdwg.mxu0
    %v94 = vmax.f32 %v92, 0.0
    %v95 = vld [vmem:[#allocation2] sm:$0xff]
    %v96 = vld [vmem:[#allocation8] sm:$0xff]
    %v97 = vld [vmem:[#allocation8 + $0x8] sm:$0xff]
    %v98 = vld [vmem:[#allocation8 + $0x10] sm:$0xff]
    %v99 = vld [vmem:[#allocation8 + $0x18] sm:$0xff]
    %v100 = vld [vmem:[#allocation8 + $0x20] sm:$0xff]
    %v101 = vld [vmem:[#allocation8 + $0x28] sm:$0xff]
    %v102 = vld [vmem:[#allocation8 + $0x30] sm:$0xff]
    %v103 = vld [vmem:[#allocation8 + $0x38] sm:$0xff]
    %v104 = vld [vmem:[#allocation8 + $0x40] sm:$0xff]
    %v105 = vld [vmem:[#allocation8 + $0x48] sm:$0xff]
    %v106 = vld [vmem:[#allocation8 + $0x50] sm:$0xff]
    %v107 = vld [vmem:[#allocation8 + $0x58] sm:$0xff]
    %v108 = vld [vmem:[#allocation8 + $0x60] sm:$0xff]
    %v109 = vld [vmem:[#allocation8 + $0x68] sm:$0xff]
    %v110 = vld [vmem:[#allocation8 + $0x70] sm:$0xff]
    %v111 = vld [vmem:[#allocation8 + $0x78] sm:$0xff]
    %112 = vmatpush.msra.mxu0 %v111
    %113 = vmatpush.msra.mxu0 %v110
    %114 = vmatpush.msra.mxu0 %v109
    %115 = vmatpush.msra.mxu0 %v108
    %116 = vmatpush.msra.mxu0 %v107
    %117 = vmatpush.msra.mxu0 %v106
    %118 = vmatpush.msra.mxu0 %v105
    %119 = vmatpush.msra.mxu0 %v104
    %120 = vmatpush.msra.mxu0 %v103
    %121 = vmatpush.msra.mxu0 %v102
    %122 = vmatpush.msra.mxu0 %v101
    %123 = vmatpush.msra.mxu0 %v100
    %124 = vmatpush.msra.mxu0 %v99
    %125 = vmatpush.msra.mxu0 %v98
    %126 = vmatpush.msra.mxu0 %v97
    %127 = vmatpush.msra.mxu0 %v96
    %128 = vmatmul.f32.gmra.mxu0 %v94
    %v129 = vpop.f32.mrf.mxu0
    %v130 = vadd.f32 0.0, %v129
    %131 = vdwg.mxu0
    %v132 = vadd.f32 %v95, %v130
    %133 = vst [vmem:[#allocation2] sm:$0xff] %v132
    // Predicated region
    $region30: #{tpu_custom_call.1} parent=1 // pred_check
      %p134 = pneg %p60
    $region31: #{tpu_custom_call.1} parent=1 // pred_check_branch
      %136 = sbr.rel (%p134) target = $region33
    $region32: #{tpu_custom_call.1} parent=1 // pred_region
      %v137 = vld [vmem:[#allocation2] sm:$0xff]
      %v138 = vmax.f32 %v137, 0.0
      %139 = vst [vmem:[#allocation9] sm:$0xff] %v138
    $region33: #{tpu_custom_call.1} parent=1 // pred_fallthru
      _
    // Predicated region
    $region34: #{tpu_custom_call.1} parent=1 // pred_check
      _
    $region35: #{tpu_custom_call.1} parent=1 // pred_check_branch
      %141 = sbr.rel (0) target = $region37
    $region36: #{tpu_custom_call.1} parent=1 // pred_region
      %143 = vsyncadd [#allocation5], 0
      %s145 = sshll.u32 [#allocation9], 4
      %s146 = int_to_ptr.vmem [resolvable:$true] %s145
      %s147 = sshll.u32 %s3, 4
      %s148 = int_to_ptr.hbm [resolvable:$true] %s147
      %150 = dma.vmem_to_hbm [thread:$0]  %s146, 128, %s148, [#allocation5]
    $region37: #{tpu_custom_call.1} parent=1 // pred_fallthru
      _
    // Predicated region
    $region38: #{tpu_custom_call.1} parent=1 // pred_check
      _
    $region39: #{tpu_custom_call.1} parent=1 // pred_check_branch
      %152 = sbr.rel (0) target = $region41
    $region40: #{tpu_custom_call.1} parent=1 // pred_region
      %154 = dma.done [#allocation5], 128
    $region41: #{tpu_custom_call.1} parent=1 // pred_fallthru
      _
    %155 = vsyncpa [#allocation4], 1
    %156 = vsyncpa [#allocation7], 1
    %157 = vsyncpa [#allocation5], 1

</llo_original>
